<compile_context>
chip_gen: v5e
topology: v5e:2x2
jax: 0.10.0
libtpu: 0.0.40
codegen_flags: <defaults>
</compile_context>

<pallas_src>
import jax
import jax.numpy as jnp
from jax.experimental import pallas as pl
from jax.experimental.pallas import tpu as pltpu


# ---------------------------------------------------------------------------
# Kernel: whole DSDNN forward for one batch tile, everything VMEM-resident.
# ---------------------------------------------------------------------------
def _dsdnn_fused_kernel(x_ref,
                        w1_ref, b1_ref, s1_ref, t1_ref,
                        w2_ref, b2_ref, s2_ref, t2_ref,
                        w3_ref, b3_ref,
                        o_ref):
    x = x_ref[...]

    # Linear(in, H) + ReLU + folded BatchNorm1d(H)
    h = jnp.dot(x, w1_ref[...], preferred_element_type=jnp.float32) + b1_ref[...]
    h = jnp.maximum(h, 0.0) * s1_ref[...] + t1_ref[...]

    # Linear(H, H//2) + ReLU + folded BatchNorm1d(H//2)
    h = jnp.dot(h, w2_ref[...], preferred_element_type=jnp.float32) + b2_ref[...]
    h = jnp.maximum(h, 0.0) * s2_ref[...] + t2_ref[...]

    # Linear(H//2, 1)
    out = jnp.dot(h, w3_ref[...], preferred_element_type=jnp.float32) + b3_ref[...]
    o_ref[...] = out.astype(o_ref.dtype)


def _pick_batch_tile(m):
    """Batch tile: keep >=2 tiles for large batches (v7x megacore), else 1."""
    for tm in (256, 128):
        if m > tm and m % tm == 0:
            return tm
    return m


def dsdnn_forward(x, params):
    """Fused DSDNN forward.  x: (M, input_size) f32.  Returns (M, 1) f32."""
    (w1t, b1, s1, t1), (w2t, b2, s2, t2), (w3t, b3) = params
    m, k = x.shape
    h1 = w1t.shape[1]
    h2 = w2t.shape[1]
    no = w3t.shape[1]

    tm = _pick_batch_tile(m)
    grid = (m // tm,)

    # Same block index every grid step -> DMA'd once, stays resident in VMEM.
    resident = lambda i: (0, 0)

    return pl.pallas_call(
        _dsdnn_fused_kernel,
        out_shape=jax.ShapeDtypeStruct((m, no), x.dtype),
        grid=grid,
        in_specs=[
            pl.BlockSpec((tm, k), lambda i: (i, 0)),   # x batch tile
            pl.BlockSpec((k, h1), resident),           # W1^T
            pl.BlockSpec((1, h1), resident),           # b1
            pl.BlockSpec((1, h1), resident),           # BN1 scale
            pl.BlockSpec((1, h1), resident),           # BN1 shift
            pl.BlockSpec((h1, h2), resident),          # W2^T
            pl.BlockSpec((1, h2), resident),           # b2
            pl.BlockSpec((1, h2), resident),           # BN2 scale
            pl.BlockSpec((1, h2), resident),           # BN2 shift
            pl.BlockSpec((h2, no), resident),          # W3^T
            pl.BlockSpec((1, no), resident),           # b3
        ],
        out_specs=pl.BlockSpec((tm, no), lambda i: (i, 0)),
        compiler_params=pltpu.CompilerParams(
            dimension_semantics=("parallel",),
        ),
    )(x, w1t, b1, s1, t1, w2t, b2, s2, t2, w3t, b3)


# ---------------------------------------------------------------------------
# Parameter construction (deterministic, matches torch defaults in spirit).
# ---------------------------------------------------------------------------
_BN_EPS = 1e-5


def _linear_params(key, in_f, out_f):
    kw, kb = jax.random.split(key)
    bound = 1.0 / (in_f ** 0.5)
    w = jax.random.uniform(kw, (out_f, in_f), jnp.float32, -bound, bound)
    b = jax.random.uniform(kb, (out_f,), jnp.float32, -bound, bound)
    return w, b


def _bn_params(key, n):
    kg, kb, km, kv = jax.random.split(key, 4)
    gamma = jax.random.uniform(kg, (n,), jnp.float32, 0.5, 1.5)
    beta = 0.1 * jax.random.normal(kb, (n,), jnp.float32)
    mean = 0.1 * jax.random.normal(km, (n,), jnp.float32)
    var = jax.random.uniform(kv, (n,), jnp.float32, 0.5, 1.5)
    return gamma, beta, mean, var


def _fold_bn(gamma, beta, mean, var, eps=_BN_EPS):
    scale = gamma / jnp.sqrt(var + eps)
    shift = beta - mean * scale
    return scale.reshape(1, -1), shift.reshape(1, -1)


def make_dsdnn_params(input_size, hidden_size, seed=0):
    """Returns (raw_params_for_reference, kernel_params)."""
    key = jax.random.PRNGKey(seed)
    k1, k2, k3, kb1, kb2 = jax.random.split(key, 5)

    w1, b1 = _linear_params(k1, input_size, hidden_size)
    w2, b2 = _linear_params(k2, hidden_size, hidden_size // 2)
    w3, b3 = _linear_params(k3, hidden_size // 2, 1)
    bn1 = _bn_params(kb1, hidden_size)
    bn2 = _bn_params(kb2, hidden_size // 2)

    raw = ((w1, b1, bn1), (w2, b2, bn2), (w3, b3))

    s1, t1 = _fold_bn(*bn1)
    s2, t2 = _fold_bn(*bn2)
    kernel_params = (
        (w1.T, b1.reshape(1, -1), s1, t1),
        (w2.T, b2.reshape(1, -1), s2, t2),
        (w3.T, b3.reshape(1, -1)),
    )
    return raw, kernel_params


# ---------------------------------------------------------------------------
# Pure-JAX reference (unfused, full eval-mode BatchNorm formula).
# ---------------------------------------------------------------------------
def dsdnn_reference(x, raw):
    (w1, b1, bn1), (w2, b2, bn2), (w3, b3) = raw
    hi = jax.lax.Precision.HIGHEST

    h = jnp.dot(x, w1.T, precision=hi) + b1
    h = jnp.maximum(h, 0.0)
    g, be, m, v = bn1
    h = (h - m) / jnp.sqrt(v + _BN_EPS) * g + be

    h = jnp.dot(h, w2.T, precision=hi) + b2
    h = jnp.maximum(h, 0.0)
    g, be, m, v = bn2
    h = (h - m) / jnp.sqrt(v + _BN_EPS) * g + be

    return jnp.dot(h, w3.T, precision=hi) + b3


if __name__ == "__main__":
    input_size = 256
    hidden_size = 128
    batch = 8

    raw_params, kernel_params = make_dsdnn_params(input_size, hidden_size, seed=0)

    x = jax.random.normal(jax.random.PRNGKey(0), (batch, input_size), jnp.float32)

    out = jax.jit(dsdnn_forward)(x, kernel_params)
    jax.block_until_ready(out)
    assert out.shape == (batch, 1)

    ref = dsdnn_reference(x, raw_params)
    max_err = float(jnp.max(jnp.abs(out - ref)))
    assert jnp.allclose(out, ref, atol=1e-4, rtol=1e-4), max_err

    print("KERNEL_OK")
</pallas_src>

<mosaic_0001>
module attributes {stable_mosaic.version = 11 : i64} {
  func.func @_dsdnn_fused_kernel(%arg0: i32, %arg1: memref<8x256xf32, #tpu.memory_space<vmem>>, %arg2: memref<256x128xf32, #tpu.memory_space<vmem>>, %arg3: memref<1x128xf32, #tpu.memory_space<vmem>>, %arg4: memref<1x128xf32, #tpu.memory_space<vmem>>, %arg5: memref<1x128xf32, #tpu.memory_space<vmem>>, %arg6: memref<128x64xf32, #tpu.memory_space<vmem>>, %arg7: memref<1x64xf32, #tpu.memory_space<vmem>>, %arg8: memref<1x64xf32, #tpu.memory_space<vmem>>, %arg9: memref<1x64xf32, #tpu.memory_space<vmem>>, %arg10: memref<64x1xf32, #tpu.memory_space<vmem>>, %arg11: memref<1x1xf32, #tpu.memory_space<vmem>>, %arg12: memref<8x1xf32, #tpu.memory_space<vmem>>) attributes {dimension_semantics = [#tpu.dimension_semantics<parallel>], iteration_bounds = array<i64: 1>, scalar_prefetch = 0 : i64, scratch_operands = 0 : i64, tpu.core_type = #tpu.core_type<tc>, window_params = [{transform_indices = @transform_0, window_bounds = array<i64: 8, 256>}, {pipeline_mode = #tpu.pipeline_mode<synchronous>, transform_indices = @transform_1, window_bounds = array<i64: 256, 128>}, {pipeline_mode = #tpu.pipeline_mode<synchronous>, transform_indices = @transform_2, window_bounds = array<i64: 1, 128>}, {pipeline_mode = #tpu.pipeline_mode<synchronous>, transform_indices = @transform_3, window_bounds = array<i64: 1, 128>}, {pipeline_mode = #tpu.pipeline_mode<synchronous>, transform_indices = @transform_4, window_bounds = array<i64: 1, 128>}, {pipeline_mode = #tpu.pipeline_mode<synchronous>, transform_indices = @transform_5, window_bounds = array<i64: 128, 64>}, {pipeline_mode = #tpu.pipeline_mode<synchronous>, transform_indices = @transform_6, window_bounds = array<i64: 1, 64>}, {pipeline_mode = #tpu.pipeline_mode<synchronous>, transform_indices = @transform_7, window_bounds = array<i64: 1, 64>}, {pipeline_mode = #tpu.pipeline_mode<synchronous>, transform_indices = @transform_8, window_bounds = array<i64: 1, 64>}, {pipeline_mode = #tpu.pipeline_mode<synchronous>, transform_indices = @transform_9, window_bounds = array<i64: 64, 1>}, {pipeline_mode = #tpu.pipeline_mode<synchronous>, transform_indices = @transform_10, window_bounds = array<i64: 1, 1>}, {transform_indices = @transform_11, window_bounds = array<i64: 8, 1>}]} {
    %c0 = arith.constant 0 : index
    %c0_0 = arith.constant 0 : index
    %0 = vector.load %arg1[%c0, %c0_0] : memref<8x256xf32, #tpu.memory_space<vmem>>, vector<8x256xf32>
    %c0_1 = arith.constant 0 : index
    %c0_2 = arith.constant 0 : index
    %1 = vector.load %arg2[%c0_1, %c0_2] : memref<256x128xf32, #tpu.memory_space<vmem>>, vector<256x128xf32>
    %cst = arith.constant dense<0.000000e+00> : vector<8x128xf32>
    %2 = tpu.matmul %0, %1, %cst {dimension_numbers = #tpu.dot_dimension_numbers<[1], [0], [0], [1], [0, 0, 1, 1], [], []>} : vector<8x256xf32>, vector<256x128xf32>, vector<8x128xf32> -> vector<8x128xf32>
    %c0_3 = arith.constant 0 : index
    %c0_4 = arith.constant 0 : index
    %3 = vector.load %arg3[%c0_3, %c0_4] : memref<1x128xf32, #tpu.memory_space<vmem>>, vector<1x128xf32>
    %4 = vector.broadcast %3 : vector<1x128xf32> to vector<8x128xf32>
    %5 = arith.addf %2, %4 : vector<8x128xf32>
    %cst_5 = arith.constant 0.000000e+00 : f32
    %6 = vector.broadcast %cst_5 : f32 to vector<8x128xf32>
    %7 = arith.maximumf %5, %6 : vector<8x128xf32>
    %c0_6 = arith.constant 0 : index
    %c0_7 = arith.constant 0 : index
    %8 = vector.load %arg4[%c0_6, %c0_7] : memref<1x128xf32, #tpu.memory_space<vmem>>, vector<1x128xf32>
    %9 = vector.broadcast %8 : vector<1x128xf32> to vector<8x128xf32>
    %10 = arith.mulf %7, %9 : vector<8x128xf32>
    %c0_8 = arith.constant 0 : index
    %c0_9 = arith.constant 0 : index
    %11 = vector.load %arg5[%c0_8, %c0_9] : memref<1x128xf32, #tpu.memory_space<vmem>>, vector<1x128xf32>
    %12 = vector.broadcast %11 : vector<1x128xf32> to vector<8x128xf32>
    %13 = arith.addf %10, %12 : vector<8x128xf32>
    %c0_10 = arith.constant 0 : index
    %c0_11 = arith.constant 0 : index
    %14 = vector.load %arg6[%c0_10, %c0_11] : memref<128x64xf32, #tpu.memory_space<vmem>>, vector<128x64xf32>
    %cst_12 = arith.constant dense<0.000000e+00> : vector<8x64xf32>
    %15 = tpu.matmul %13, %14, %cst_12 {dimension_numbers = #tpu.dot_dimension_numbers<[1], [0], [0], [1], [0, 0, 1, 1], [], []>} : vector<8x128xf32>, vector<128x64xf32>, vector<8x64xf32> -> vector<8x64xf32>
    %c0_13 = arith.constant 0 : index
    %c0_14 = arith.constant 0 : index
    %16 = vector.load %arg7[%c0_13, %c0_14] : memref<1x64xf32, #tpu.memory_space<vmem>>, vector<1x64xf32>
    %17 = vector.broadcast %16 : vector<1x64xf32> to vector<8x64xf32>
    %18 = arith.addf %15, %17 : vector<8x64xf32>
    %cst_15 = arith.constant 0.000000e+00 : f32
    %19 = vector.broadcast %cst_15 : f32 to vector<8x64xf32>
    %20 = arith.maximumf %18, %19 : vector<8x64xf32>
    %c0_16 = arith.constant 0 : index
    %c0_17 = arith.constant 0 : index
    %21 = vector.load %arg8[%c0_16, %c0_17] : memref<1x64xf32, #tpu.memory_space<vmem>>, vector<1x64xf32>
    %22 = vector.broadcast %21 : vector<1x64xf32> to vector<8x64xf32>
    %23 = arith.mulf %20, %22 : vector<8x64xf32>
    %c0_18 = arith.constant 0 : index
    %c0_19 = arith.constant 0 : index
    %24 = vector.load %arg9[%c0_18, %c0_19] : memref<1x64xf32, #tpu.memory_space<vmem>>, vector<1x64xf32>
    %25 = vector.broadcast %24 : vector<1x64xf32> to vector<8x64xf32>
    %26 = arith.addf %23, %25 : vector<8x64xf32>
    %c0_20 = arith.constant 0 : index
    %c0_21 = arith.constant 0 : index
    %27 = vector.load %arg10[%c0_20, %c0_21] : memref<64x1xf32, #tpu.memory_space<vmem>>, vector<64x1xf32>
    %cst_22 = arith.constant dense<0.000000e+00> : vector<8x1xf32>
    %28 = tpu.matmul %26, %27, %cst_22 {dimension_numbers = #tpu.dot_dimension_numbers<[1], [0], [0], [1], [0, 0, 1, 1], [], []>} : vector<8x64xf32>, vector<64x1xf32>, vector<8x1xf32> -> vector<8x1xf32>
    %c0_23 = arith.constant 0 : index
    %c0_24 = arith.constant 0 : index
    %29 = vector.load %arg11[%c0_23, %c0_24] : memref<1x1xf32, #tpu.memory_space<vmem>>, vector<1x1xf32>
    %30 = vector.broadcast %29 : vector<1x1xf32> to vector<8x1xf32>
    %31 = arith.addf %28, %30 : vector<8x1xf32>
    %c0_25 = arith.constant 0 : index
    %c0_26 = arith.constant 0 : index
    %32 = vector.load %arg12[%c0_25, %c0_26] : memref<8x1xf32, #tpu.memory_space<vmem>>, vector<8x1xf32>
    tpu.vector_store %arg12[%c0_25, %c0_26], %31 {strides = array<i32>} : memref<8x1xf32, #tpu.memory_space<vmem>>, vector<8x1xf32>,
    return
  }
  func.func @transform_0(%arg0: i32) -> (i32, i32) {
    %c0_i32 = arith.constant 0 : i32
    %c0_i32_0 = arith.constant 0 : i32
    return %arg0, %c0_i32 : i32, i32
  }
  func.func @transform_1(%arg0: i32) -> (i32, i32) {
    %c0_i32 = arith.constant 0 : i32
    %c0_i32_0 = arith.constant 0 : i32
    %c0_i32_1 = arith.constant 0 : i32
    return %c0_i32, %c0_i32_0 : i32, i32
  }
  func.func @transform_2(%arg0: i32) -> (i32, i32) {
    %c0_i32 = arith.constant 0 : i32
    %c0_i32_0 = arith.constant 0 : i32
    %c0_i32_1 = arith.constant 0 : i32
    return %c0_i32, %c0_i32_0 : i32, i32
  }
  func.func @transform_3(%arg0: i32) -> (i32, i32) {
    %c0_i32 = arith.constant 0 : i32
    %c0_i32_0 = arith.constant 0 : i32
    %c0_i32_1 = arith.constant 0 : i32
    return %c0_i32, %c0_i32_0 : i32, i32
  }
  func.func @transform_4(%arg0: i32) -> (i32, i32) {
    %c0_i32 = arith.constant 0 : i32
    %c0_i32_0 = arith.constant 0 : i32
    %c0_i32_1 = arith.constant 0 : i32
    return %c0_i32, %c0_i32_0 : i32, i32
  }
  func.func @transform_5(%arg0: i32) -> (i32, i32) {
    %c0_i32 = arith.constant 0 : i32
    %c0_i32_0 = arith.constant 0 : i32
    %c0_i32_1 = arith.constant 0 : i32
    return %c0_i32, %c0_i32_0 : i32, i32
  }
  func.func @transform_6(%arg0: i32) -> (i32, i32) {
    %c0_i32 = arith.constant 0 : i32
    %c0_i32_0 = arith.constant 0 : i32
    %c0_i32_1 = arith.constant 0 : i32
    return %c0_i32, %c0_i32_0 : i32, i32
  }
  func.func @transform_7(%arg0: i32) -> (i32, i32) {
    %c0_i32 = arith.constant 0 : i32
    %c0_i32_0 = arith.constant 0 : i32
    %c0_i32_1 = arith.constant 0 : i32
    return %c0_i32, %c0_i32_0 : i32, i32
  }
  func.func @transform_8(%arg0: i32) -> (i32, i32) {
    %c0_i32 = arith.constant 0 : i32
    %c0_i32_0 = arith.constant 0 : i32
    %c0_i32_1 = arith.constant 0 : i32
    return %c0_i32, %c0_i32_0 : i32, i32
  }
  func.func @transform_9(%arg0: i32) -> (i32, i32) {
    %c0_i32 = arith.constant 0 : i32
    %c0_i32_0 = arith.constant 0 : i32
    %c0_i32_1 = arith.constant 0 : i32
    return %c0_i32, %c0_i32_0 : i32, i32
  }
  func.func @transform_10(%arg0: i32) -> (i32, i32) {
    %c0_i32 = arith.constant 0 : i32
    %c0_i32_0 = arith.constant 0 : i32
    %c0_i32_1 = arith.constant 0 : i32
    return %c0_i32, %c0_i32_0 : i32, i32
  }
  func.func @transform_11(%arg0: i32) -> (i32, i32) {
    %c0_i32 = arith.constant 0 : i32
    %c0_i32_0 = arith.constant 0 : i32
    return %arg0, %c0_i32 : i32, i32
  }
}

</mosaic_0001>

<llo_original>
// kernel: dsdnn_forward.1
$region0: #{dsdnn_forward.1}
  #allocation0 [shape = 'u32[]', space=smem, size = 0x4, offset = 0x4, fixed_abs, tag = 'smem constant byte address 0x4 - core index']
  #allocation1 [shape = 'u32[72,128]{1,0:T(1,128)}', space=vmem, size = 0x9000, scoped, tag = 'internal scratch']
  #allocation2 [shape = 'f32[1,1]{1,0:T(1,128)S(1)}', space=vmem, size = 0x200, scoped, tag = 'scoped memory for dsdnn_forward.1']
  %s0 = inlined_call_operand.vmem [shape: f32[8,256], index: 0, kind: input, shape index: {}]
  %s1 = inlined_call_operand.hbm [shape: f32[256,128], index: 1, kind: input, shape index: {}]
  %s2 = inlined_call_operand.vmem [shape: f32[1,128], index: 2, kind: input, shape index: {}]
  %s3 = inlined_call_operand.vmem [shape: f32[1,128], index: 3, kind: input, shape index: {}]
  %s4 = inlined_call_operand.vmem [shape: f32[1,128], index: 4, kind: input, shape index: {}]
  %s5 = inlined_call_operand.vmem [shape: f32[128,64], index: 5, kind: input, shape index: {}]
  %s6 = inlined_call_operand.vmem [shape: f32[1,64], index: 6, kind: input, shape index: {}]
  %s7 = inlined_call_operand.vmem [shape: f32[1,64], index: 7, kind: input, shape index: {}]
  %s8 = inlined_call_operand.vmem [shape: f32[1,64], index: 8, kind: input, shape index: {}]
  %s9 = inlined_call_operand.vmem [shape: f32[64,1], index: 9, kind: input, shape index: {}]
  %s10 = inlined_call_operand.<no memory space> [shape: f32[1,1], index: 10, kind: input, shape index: {}]
  %s11 = inlined_call_operand.vmem [shape: f32[8,1], index: 11, kind: output, shape index: {}]
  %s12 = sld [smem:[#allocation0]]
  $region58: #{dsdnn_forward.1} parent=0
    _
  %s14 = ssub.s32 1, %s12
  %s15 = scalar_select 0, %s14, %s12
  %v16 = vstv %s10
  %17 = vst [vmem:[#allocation2] sm:$0x1] %v16
  $region1: #{dsdnn_forward.1} parent=0
    #allocation3 [shape = 'u8[131072]{0}', space=vmem, size = 0x20000, scoped, tag = 'input window, operand 1, single buffered']
    #allocation4 [shape = 's32[1]{0}', space=sflag, size = 0x4, scoped, tag = 'scoped memory for dsdnn_forward.1']
    %18 = vsyncpa [#allocation4], 0
    // Predicated region
    $region2: #{dsdnn_forward.1} parent=1 // pred_check
      _
    $region3: #{dsdnn_forward.1} parent=1 // pred_check_branch
      %20 = sbr.rel (0) target = $region5
    $region4: #{dsdnn_forward.1} parent=1 // pred_region
      _
    $region5: #{dsdnn_forward.1} parent=1 // pred_fallthru
      _
    // Predicated region
    $region6: #{dsdnn_forward.1} parent=1 // pred_check
      _
    $region7: #{dsdnn_forward.1} parent=1 // pred_check_branch
      %22 = sbr.rel (0) target = $region9
    $region8: #{dsdnn_forward.1} parent=1 // pred_region
      %24 = vsyncadd [#allocation4], 0
      %s25 = sshll.u32 %s1, 4
      %s26 = int_to_ptr.hbm [resolvable:$true] %s25
      %s27 = sshll.u32 [#allocation3], 4
      %s28 = int_to_ptr.vmem [resolvable:$true] %s27
      %33 = dma.hbm_to_vmem [thread:$0]  %s26, 4096, %s28, [#allocation4], 128, 128, 8
    $region9: #{dsdnn_forward.1} parent=1 // pred_fallthru
      _
    // Predicated region
    $region10: #{dsdnn_forward.1} parent=1 // pred_check
      _
    $region11: #{dsdnn_forward.1} parent=1 // pred_check_branch
      %35 = sbr.rel (0) target = $region13
    $region12: #{dsdnn_forward.1} parent=1 // pred_region
      _
    $region13: #{dsdnn_forward.1} parent=1 // pred_fallthru
      _
    // Predicated region
    $region14: #{dsdnn_forward.1} parent=1 // pred_check
      _
    $region15: #{dsdnn_forward.1} parent=1 // pred_check_branch
      %37 = sbr.rel (0) target = $region17
    $region16: #{dsdnn_forward.1} parent=1 // pred_region
      _
    $region17: #{dsdnn_forward.1} parent=1 // pred_fallthru
      _
    // Predicated region
    $region18: #{dsdnn_forward.1} parent=1 // pred_check
      _
    $region19: #{dsdnn_forward.1} parent=1 // pred_check_branch
      %39 = sbr.rel (0) target = $region21
    $region20: #{dsdnn_forward.1} parent=1 // pred_region
      _
    $region21: #{dsdnn_forward.1} parent=1 // pred_fallthru
      _
    // Predicated region
    $region22: #{dsdnn_forward.1} parent=1 // pred_check
      _
    $region23: #{dsdnn_forward.1} parent=1 // pred_check_branch
      %41 = sbr.rel (0) target = $region25
    $region24: #{dsdnn_forward.1} parent=1 // pred_region
      _
    $region25: #{dsdnn_forward.1} parent=1 // pred_fallthru
      _
    // Predicated region
    $region26: #{dsdnn_forward.1} parent=1 // pred_check
      _
    $region27: #{dsdnn_forward.1} parent=1 // pred_check_branch
      %43 = sbr.rel (0) target = $region29
    $region28: #{dsdnn_forward.1} parent=1 // pred_region
      _
    $region29: #{dsdnn_forward.1} parent=1 // pred_fallthru
      _
    // Predicated region
    $region30: #{dsdnn_forward.1} parent=1 // pred_check
      _
    $region31: #{dsdnn_forward.1} parent=1 // pred_check_branch
      %45 = sbr.rel (0) target = $region33
    $region32: #{dsdnn_forward.1} parent=1 // pred_region
      _
    $region33: #{dsdnn_forward.1} parent=1 // pred_fallthru
      _
    // Predicated region
    $region34: #{dsdnn_forward.1} parent=1 // pred_check
      _
    $region35: #{dsdnn_forward.1} parent=1 // pred_check_branch
      %47 = sbr.rel (0) target = $region37
    $region36: #{dsdnn_forward.1} parent=1 // pred_region
      _
    $region37: #{dsdnn_forward.1} parent=1 // pred_fallthru
      _
    // Predicated region
    $region38: #{dsdnn_forward.1} parent=1 // pred_check
      _
    $region39: #{dsdnn_forward.1} parent=1 // pred_check_branch
      %49 = sbr.rel (0) target = $region41
    $region40: #{dsdnn_forward.1} parent=1 // pred_region
      _
    $region41: #{dsdnn_forward.1} parent=1 // pred_fallthru
      _
    // Predicated region
    $region42: #{dsdnn_forward.1} parent=1 // pred_check
      _
    $region43: #{dsdnn_forward.1} parent=1 // pred_check_branch
      %51 = sbr.rel (0) target = $region45
    $region44: #{dsdnn_forward.1} parent=1 // pred_region
      _
    $region45: #{dsdnn_forward.1} parent=1 // pred_fallthru
      _
    // Predicated region
    $region46: #{dsdnn_forward.1} parent=1 // pred_check
      _
    $region47: #{dsdnn_forward.1} parent=1 // pred_check_branch
      %53 = sbr.rel (0) target = $region49
    $region48: #{dsdnn_forward.1} parent=1 // pred_region
      %55 = dma.done [#allocation4], 4096
    $region49: #{dsdnn_forward.1} parent=1 // pred_fallthru
      _
    %v56 = vld [vmem:[%s0] sm:$0xff]
    %v57 = vld [vmem:[%s0 + $0x8] sm:$0xff]
    %v58 = vld [vmem:[#allocation3] sm:$0xff]
    %v59 = vld [vmem:[#allocation3 + $0x8] sm:$0xff]
    %v60 = vld [vmem:[#allocation3 + $0x10] sm:$0xff]
    %v61 = vld [vmem:[#allocation3 + $0x18] sm:$0xff]
    %v62 = vld [vmem:[#allocation3 + $0x20] sm:$0xff]
    %v63 = vld [vmem:[#allocation3 + $0x28] sm:$0xff]
    %v64 = vld [vmem:[#allocation3 + $0x30] sm:$0xff]
    %v65 = vld [vmem:[#allocation3 + $0x38] sm:$0xff]
    %v66 = vld [vmem:[#allocation3 + $0x40] sm:$0xff]
    %v67 = vld [vmem:[#allocation3 + $0x48] sm:$0xff]
    %v68 = vld [vmem:[#allocation3 + $0x50] sm:$0xff]
    %v69 = vld [vmem:[#allocation3 + $0x58] sm:$0xff]
    %v70 = vld [vmem:[#allocation3 + $0x60] sm:$0xff]
    %v71 = vld [vmem:[#allocation3 + $0x68] sm:$0xff]
    %v72 = vld [vmem:[#allocation3 + $0x70] sm:$0xff]
    %v73 = vld [vmem:[#allocation3 + $0x78] sm:$0xff]
    %v74 = vld [vmem:[#allocation3 + $0x80] sm:$0xff]
    %v75 = vld [vmem:[#allocation3 + $0x88] sm:$0xff]
    %v76 = vld [vmem:[#allocation3 + $0x90] sm:$0xff]
    %v77 = vld [vmem:[#allocation3 + $0x98] sm:$0xff]
    %v78 = vld [vmem:[#allocation3 + $0xa0] sm:$0xff]
    %v79 = vld [vmem:[#allocation3 + $0xa8] sm:$0xff]
    %v80 = vld [vmem:[#allocation3 + $0xb0] sm:$0xff]
    %v81 = vld [vmem:[#allocation3 + $0xb8] sm:$0xff]
    %v82 = vld [vmem:[#allocation3 + $0xc0] sm:$0xff]
    %v83 = vld [vmem:[#allocation3 + $0xc8] sm:$0xff]
    %v84 = vld [vmem:[#allocation3 + $0xd0] sm:$0xff]
    %v85 = vld [vmem:[#allocation3 + $0xd8] sm:$0xff]
    %v86 = vld [vmem:[#allocation3 + $0xe0] sm:$0xff]
    %v87 = vld [vmem:[#allocation3 + $0xe8] sm:$0xff]
    %v88 = vld [vmem:[#allocation3 + $0xf0] sm:$0xff]
    %v89 = vld [vmem:[#allocation3 + $0xf8] sm:$0xff]
    %v90 = vld [vmem:[%s2] sm:$0x1]
    %v92 = vperm.slane %v90, 0
    %94 = vmatpush.msra.mxu0 %v73
    %95 = vmatpush.msra.mxu0 %v72
    %96 = vmatpush.msra.mxu0 %v71
    %97 = vmatpush.msra.mxu0 %v70
    %98 = vmatpush.msra.mxu0 %v69
    %99 = vmatpush.msra.mxu0 %v68
    %100 = vmatpush.msra.mxu0 %v67
    %101 = vmatpush.msra.mxu0 %v66
    %102 = vmatpush.msra.mxu0 %v65
    %103 = vmatpush.msra.mxu0 %v64
    %104 = vmatpush.msra.mxu0 %v63
    %105 = vmatpush.msra.mxu0 %v62
    %106 = vmatpush.msra.mxu0 %v61
    %107 = vmatpush.msra.mxu0 %v60
    %108 = vmatpush.msra.mxu0 %v59
    %109 = vmatpush.msra.mxu0 %v58
    %110 = vmatmul.f32.gmra.mxu0 %v56
    %v111 = vpop.f32.mrf.mxu0
    %v112 = vadd.f32 %v92, %v111
    %113 = vdwg.mxu0
    %114 = vmatpush.msra.mxu0 %v89
    %115 = vmatpush.msra.mxu0 %v88
    %116 = vmatpush.msra.mxu0 %v87
    %117 = vmatpush.msra.mxu0 %v86
    %118 = vmatpush.msra.mxu0 %v85
    %119 = vmatpush.msra.mxu0 %v84
    %120 = vmatpush.msra.mxu0 %v83
    %121 = vmatpush.msra.mxu0 %v82
    %122 = vmatpush.msra.mxu0 %v81
    %123 = vmatpush.msra.mxu0 %v80
    %124 = vmatpush.msra.mxu0 %v79
    %125 = vmatpush.msra.mxu0 %v78
    %126 = vmatpush.msra.mxu0 %v77
    %127 = vmatpush.msra.mxu0 %v76
    %128 = vmatpush.msra.mxu0 %v75
    %129 = vmatpush.msra.mxu0 %v74
    %130 = vmatmul.f32.gmra.mxu0 %v57
    %v131 = vpop.f32.mrf.mxu0
    %v132 = vadd.f32 %v112, %v131
    %133 = vdwg.mxu0
    %v134 = vmax.f32 %v132, 0.0
    %v135 = vld [vmem:[%s3] sm:$0x1]
    %v137 = vperm.slane %v135, 0
    %v139 = vmul.f32 %v134, %v137
    %v140 = vld [vmem:[%s4] sm:$0x1]
    %v142 = vperm.slane %v140, 0
    %v144 = vadd.f32 %v139, %v142
    %v145 = vld [vmem:[%s5] sm:$0xff]
    %v146 = vld [vmem:[%s5 + $0x8] sm:$0xff]
    %v147 = vld [vmem:[%s5 + $0x10] sm:$0xff]
    %v148 = vld [vmem:[%s5 + $0x18] sm:$0xff]
    %v149 = vld [vmem:[%s5 + $0x20] sm:$0xff]
    %v150 = vld [vmem:[%s5 + $0x28] sm:$0xff]
    %v151 = vld [vmem:[%s5 + $0x30] sm:$0xff]
    %v152 = vld [vmem:[%s5 + $0x38] sm:$0xff]
    %v153 = vld [vmem:[%s5 + $0x40] sm:$0xff]
    %v154 = vld [vmem:[%s5 + $0x48] sm:$0xff]
    %v155 = vld [vmem:[%s5 + $0x50] sm:$0xff]
    %v156 = vld [vmem:[%s5 + $0x58] sm:$0xff]
    %v157 = vld [vmem:[%s5 + $0x60] sm:$0xff]
    %v158 = vld [vmem:[%s5 + $0x68] sm:$0xff]
    %v159 = vld [vmem:[%s5 + $0x70] sm:$0xff]
    %v160 = vld [vmem:[%s5 + $0x78] sm:$0xff]
    %v161 = vld [vmem:[%s6] sm:$0x1]
    %v163 = vperm.slane %v161, 0
    %165 = vmatpush.msra.mxu0 %v160
    %166 = vmatpush.msra.mxu0 %v159
    %167 = vmatpush.msra.mxu0 %v158
    %168 = vmatpush.msra.mxu0 %v157
    %169 = vmatpush.msra.mxu0 %v156
    %170 = vmatpush.msra.mxu0 %v155
    %171 = vmatpush.msra.mxu0 %v154
    %172 = vmatpush.msra.mxu0 %v153
    %173 = vmatpush.msra.mxu0 %v152
    %174 = vmatpush.msra.mxu0 %v151
    %175 = vmatpush.msra.mxu0 %v150
    %176 = vmatpush.msra.mxu0 %v149
    %177 = vmatpush.msra.mxu0 %v148
    %178 = vmatpush.msra.mxu0 %v147
    %179 = vmatpush.msra.mxu0 %v146
    %180 = vmatpush.msra.mxu0 %v145
    %181 = vmatmul.f32.gmra.mxu0 %v144
    %v182 = vpop.f32.mrf.mxu0
    %v183 = vadd.f32 %v163, %v182
    %184 = vdwg.mxu0
    %v185 = vmax.f32 %v183, 0.0
    %v186 = vld [vmem:[%s7] sm:$0x1]
    %v188 = vperm.slane %v186, 0
    %v190 = vmul.f32 %v185, %v188
    %v191 = vld [vmem:[%s8] sm:$0x1]
    %v193 = vperm.slane %v191, 0
    %v195 = vadd.f32 %v190, %v193
    %v196 = vld [vmem:[%s9] sm:$0xff]
    %v197 = vld [vmem:[%s9 + $0x8] sm:$0xff]
    %v198 = vld [vmem:[%s9 + $0x10] sm:$0xff]
    %v199 = vld [vmem:[%s9 + $0x18] sm:$0xff]
    %v200 = vld [vmem:[%s9 + $0x20] sm:$0xff]
    %v201 = vld [vmem:[%s9 + $0x28] sm:$0xff]
    %v202 = vld [vmem:[%s9 + $0x30] sm:$0xff]
    %v203 = vld [vmem:[%s9 + $0x38] sm:$0xff]
    %v204 = vld [vmem:[#allocation2] sm:$0x1]
    %v206 = vperm.slane %v204, 0
    %vm208 = vcmask 523264
    %v210 = vsel %vm208, %v195, 0
    %212 = vmatpush.msra.mxu0 0.0
    %213 = vmatpush.msra.mxu0 0.0
    %214 = vmatpush.msra.mxu0 0.0
    %215 = vmatpush.msra.mxu0 0.0
    %216 = vmatpush.msra.mxu0 0.0
    %217 = vmatpush.msra.mxu0 0.0
    %218 = vmatpush.msra.mxu0 0.0
    %219 = vmatpush.msra.mxu0 0.0
    %220 = vmatpush.msra.mxu0 %v203
    %221 = vmatpush.msra.mxu0 %v202
    %222 = vmatpush.msra.mxu0 %v201
    %223 = vmatpush.msra.mxu0 %v200
    %224 = vmatpush.msra.mxu0 %v199
    %225 = vmatpush.msra.mxu0 %v198
    %226 = vmatpush.msra.mxu0 %v197
    %227 = vmatpush.msra.mxu0 %v196
    %228 = vmatmul.f32.gmra.mxu0 %v210
    %v229 = vpop.f32.mrf.mxu0
    %v230 = vadd.f32 %v206, %v229
    %231 = vdwg.mxu0
    %vm232 = vcmask 7168
    %233 = vst.msk [vmem:[%s11] sm:$0xff] %vm232, %v230
    // Predicated region
    $region50: #{dsdnn_forward.1} parent=1 // pred_check
      _
    $region51: #{dsdnn_forward.1} parent=1 // pred_check_branch
      %235 = sbr.rel (0) target = $region53
    $region52: #{dsdnn_forward.1} parent=1 // pred_region
      _
    $region53: #{dsdnn_forward.1} parent=1 // pred_fallthru
      _
    // Predicated region
    $region54: #{dsdnn_forward.1} parent=1 // pred_check
      _
    $region55: #{dsdnn_forward.1} parent=1 // pred_check_branch
      %237 = sbr.rel (0) target = $region57
    $region56: #{dsdnn_forward.1} parent=1 // pred_region
      _
    $region57: #{dsdnn_forward.1} parent=1 // pred_fallthru
      _
    %238 = vsyncpa [#allocation4], 1

</llo_original>
